<compile_context>
chip_gen: v7x
topology: tpu7x:2x2x1
jax: 0.10.0
libtpu: 0.0.40
codegen_flags: <defaults>
</compile_context>

<pallas_src>
import math

import jax
import jax.numpy as jnp
from jax.experimental import pallas as pl
from jax.experimental.pallas import tpu as pltpu

LOG_STD_MAX = 2.0
LOG_STD_MIN = -20.0


def _softplus(z):
    # Numerically stable softplus from ops that lower cleanly in Mosaic.
    # (Activations stay f32 even on the bf16 weight path, so the log(1+x)
    #  form is accurate enough at these tolerances.)
    return jnp.maximum(z, 0.0) + jnp.log(1.0 + jnp.exp(-jnp.abs(z)))


def make_actor_kernel(n_hidden, act_dim, act_limit, use_bf16):
    """Kernel for a trunk of `n_hidden` Linear+ReLU layers plus a fused
    (mu | log_std) head, in the transposed [features, batch] layout."""

    # Per-row constant of log N(pi; mu, std).sum() and the tanh correction.
    logp_const = -float(act_dim) * (0.5 * math.log(2.0 * math.pi)
                                    + 2.0 * math.log(2.0))

    def kernel(*refs):
        obs_ref, eps_ref = refs[0], refs[1]
        idx = 2

        # Trunk: Linear + ReLU after EVERY layer (output_activation ==
        # activation in the reference module's `mlp`).
        h = obs_ref[...]                                      # [obs_dim, bt]
        for _ in range(n_hidden):
            w_ref, b_ref = refs[idx], refs[idx + 1]
            idx += 2
            rhs = h.astype(jnp.bfloat16) if use_bf16 else h
            y = jnp.dot(w_ref[...], rhs, preferred_element_type=jnp.float32)
            h = jnp.maximum(y + b_ref[...], 0.0)              # [hidden, bt]

        # Fused head: one [2*act_dim, hidden] @ [hidden, bt] matmul.
        wh_ref, bh_ref = refs[idx], refs[idx + 1]
        out_ref = refs[idx + 2]

        rhs = h.astype(jnp.bfloat16) if use_bf16 else h
        head = jnp.dot(wh_ref[...], rhs, preferred_element_type=jnp.float32)
        head = head + bh_ref[...]                             # [2*act_dim, bt]
        mu = head[:act_dim, :]
        log_std = jnp.clip(head[act_dim:, :], LOG_STD_MIN, LOG_STD_MAX)
        std = jnp.exp(log_std)

        # rsample: pi = mu + std * eps   (eps ~ N(0,1), generated outside).
        eps = eps_ref[...]                                    # [act_dim, bt]
        pi = mu + std * eps

        # log_prob(pi).sum(-1) - sum(2*(log2 - pi - softplus(-2*pi))),
        # using (pi - mu)/std == eps and folding all constants into one scalar.
        sp = _softplus(-2.0 * pi)
        logp = (logp_const
                - 0.5 * jnp.sum(eps * eps, axis=0, keepdims=True)
                - jnp.sum(log_std, axis=0, keepdims=True)
                + 2.0 * jnp.sum(pi + sp, axis=0, keepdims=True))  # [1, bt]

        act = act_limit * jnp.tanh(pi)                        # [act_dim, bt]

        # Direct sublane-slice stores (no concatenate) -> lane-dense vst.
        out_ref[:act_dim, :] = act
        out_ref[act_dim:, :] = logp

    return kernel


def squashed_gaussian_actor(obs, eps, params, act_limit, *,
                            batch_tile=None, use_bf16=False,
                            single_buffer_weights=False,
                            vmem_limit_bytes=None):
    """Fused SquashedGaussianMLPActor forward (stochastic, with log-prob).

    obs: [B, obs_dim], eps: [B, act_dim] standard-normal noise for rsample.
    params: {'net': [(W, b), ...], 'mu': (W, b), 'log_std': (W, b)} with
      W: [in_dim, out_dim], b: [1, out_dim].

    batch_tile:
      * None (default): one tile covering up to 1024 rows -> a single grid
        step at small/medium B (best on single-TC v5e/v6e).
      * On dual-TC v7x pass round_up(B/2, 128) so the 'parallel' grid axis
        shards across both TensorCores.
    single_buffer_weights / vmem_limit_bytes: for production layer widths on
    v7x (64 MiB physical VMEM): pl.Buffered(1) on the grid-resident weight
    blocks halves their resident footprint, and raising vmem_limit_bytes
    avoids spurious scoped-VMEM OOM.  Left off at these tiny test shapes.
    """
    B, obs_dim = obs.shape
    act_dim = params["mu"][0].shape[1]
    n_hidden = len(params["net"])

    # ---- wrapper-side layout plumbing (XLA ops, outside the kernel) ----
    obs_t = obs.T                                             # [obs_dim, B]
    eps_t = eps.T                                             # [act_dim, B]

    w_cast = (lambda w: w.astype(jnp.bfloat16)) if use_bf16 else (lambda w: w)

    def pack_linear(w, b):
        # Store W as [out_dim, in_dim] (y = W @ h); biases stay f32 [out_dim, 1]
        # and are added post-MXU.
        return w_cast(w.T), b.reshape(-1, 1)

    flat_params = []
    for (w, b) in params["net"]:
        flat_params += list(pack_linear(w, b))
    # Fuse mu / log_std heads into one weight/bias (concat along out_dim).
    w_head = jnp.concatenate([params["mu"][0], params["log_std"][0]], axis=1)
    b_head = jnp.concatenate([params["mu"][1], params["log_std"][1]], axis=1)
    flat_params += list(pack_linear(w_head, b_head))

    # ---- tiling over the batch (lane) axis ----
    if batch_tile is None:
        bt = B if B <= 1024 else 1024
    else:
        bt = min(batch_tile, B)
    if bt < B:
        # When not covering the full batch, the lane block must be a
        # multiple of 128.
        bt = max(128, (bt // 128) * 128)
    grid = (pl.cdiv(B, bt),)
    # NOTE: if B % bt != 0 the final step runs the transcendental tail on
    # padded lanes; those writes are discarded, so results stay correct.

    def batch_spec(rows):
        # Batch tiles along lanes; feature rows stay whole on sublanes.
        return pl.BlockSpec((rows, bt), lambda i: (0, i))

    def resident_spec(shape):
        # Constant-index block: resident in VMEM across all grid steps.
        if single_buffer_weights:
            return pl.BlockSpec(shape, lambda i: (0, 0),
                                pipeline_mode=pl.Buffered(1))
        return pl.BlockSpec(shape, lambda i: (0, 0))

    in_specs = [batch_spec(obs_dim), batch_spec(act_dim)]
    in_specs += [resident_spec(p.shape) for p in flat_params]

    out_specs = batch_spec(act_dim + 1)
    out_shape = jax.ShapeDtypeStruct((act_dim + 1, B), jnp.float32)

    kernel = make_actor_kernel(n_hidden, act_dim, act_limit, use_bf16)

    compiler_kwargs = dict(dimension_semantics=("parallel",))
    if vmem_limit_bytes is not None:
        compiler_kwargs["vmem_limit_bytes"] = vmem_limit_bytes

    packed = pl.pallas_call(
        kernel,
        out_shape=out_shape,
        grid_spec=pltpu.PrefetchScalarGridSpec(
            num_scalar_prefetch=0,
            grid=grid,
            in_specs=in_specs,
            out_specs=out_specs,
        ),
        compiler_params=pltpu.CompilerParams(**compiler_kwargs),
    )(obs_t, eps_t, *flat_params)

    act = packed[:act_dim, :].T                               # [B, act_dim]
    logp_pi = packed[act_dim, :]                              # [B]
    return act, logp_pi


# --------------------------- pure-JAX reference ---------------------------
def reference_actor(obs, eps, params, act_limit):
    h = obs
    for (w, b) in params["net"]:
        h = jnp.maximum(h @ w + b, 0.0)
    mu = h @ params["mu"][0] + params["mu"][1]
    log_std = jnp.clip(h @ params["log_std"][0] + params["log_std"][1],
                       LOG_STD_MIN, LOG_STD_MAX)
    std = jnp.exp(log_std)
    pi = mu + std * eps
    z = (pi - mu) / std
    logp = jnp.sum(-0.5 * z * z - log_std - 0.5 * math.log(2.0 * math.pi), axis=-1)
    logp -= jnp.sum(2.0 * (math.log(2.0) - pi - jax.nn.softplus(-2.0 * pi)), axis=-1)
    return act_limit * jnp.tanh(pi), logp


# ------------------------------- init utils -------------------------------
def init_linear(key, in_dim, out_dim):
    # PyTorch nn.Linear default init: U(-1/sqrt(in), 1/sqrt(in))
    kw, kb = jax.random.split(key)
    bound = 1.0 / math.sqrt(in_dim)
    w = jax.random.uniform(kw, (in_dim, out_dim), jnp.float32, -bound, bound)
    b = jax.random.uniform(kb, (1, out_dim), jnp.float32, -bound, bound)
    return w, b


if __name__ == "__main__":
    key = jax.random.PRNGKey(0)

    batch = 256
    obs_dim = 16
    act_dim = 4
    hidden_sizes = (32, 32)
    act_limit = 1.0

    keys = jax.random.split(key, 6)

    # Parameters (deterministic, synthetic).
    params = {"net": [], "mu": None, "log_std": None}
    sizes = [obs_dim] + list(hidden_sizes)
    for j in range(len(sizes) - 1):
        params["net"].append(init_linear(keys[j], sizes[j], sizes[j + 1]))
    params["mu"] = init_linear(keys[3], hidden_sizes[-1], act_dim)
    params["log_std"] = init_linear(keys[4], hidden_sizes[-1], act_dim)

    # Inputs.
    obs = jax.random.normal(keys[5], (batch, obs_dim), jnp.float32)
    eps = jax.random.normal(jax.random.fold_in(key, 123), (batch, act_dim),
                            jnp.float32)

    act_ref, logp_ref = reference_actor(obs, eps, params, act_limit)

    # 1) f32 path, single grid step (v5e/v6e-style tiling): tight tolerance.
    act, logp = squashed_gaussian_actor(obs, eps, params, act_limit)
    jax.block_until_ready((act, logp))
    assert act.shape == (batch, act_dim) and logp.shape == (batch,)
    assert jnp.allclose(act, act_ref, atol=1e-5, rtol=1e-5), "action mismatch (f32)"
    assert jnp.allclose(logp, logp_ref, atol=1e-4, rtol=1e-4), "logp mismatch (f32)"

    # 2) Tiled path (grid=(2,), what you'd run on dual-TC v7x): same result.
    act2, logp2 = squashed_gaussian_actor(obs, eps, params, act_limit,
                                          batch_tile=128)
    jax.block_until_ready((act2, logp2))
    assert jnp.allclose(act2, act_ref, atol=1e-5, rtol=1e-5), "action mismatch (tiled)"
    assert jnp.allclose(logp2, logp_ref, atol=1e-4, rtol=1e-4), "logp mismatch (tiled)"

    # 3) bf16 MXU-feed path (f32 accumulation): looser-tolerance validation.
    act3, logp3 = squashed_gaussian_actor(obs, eps, params, act_limit,
                                          use_bf16=True)
    jax.block_until_ready((act3, logp3))
    assert jnp.allclose(act3, act_ref, atol=1e-1, rtol=5e-2), "action mismatch (bf16)"
    assert jnp.allclose(logp3, logp_ref, atol=5e-1, rtol=5e-2), "logp mismatch (bf16)"

    print("KERNEL_OK")
</pallas_src>

<mosaic_0001>
module attributes {stable_mosaic.version = 11 : i64} {
  func.func @kernel(%arg0: i32, %arg1: memref<16x256xf32, #tpu.memory_space<vmem>>, %arg2: memref<4x256xf32, #tpu.memory_space<vmem>>, %arg3: memref<32x16xf32, #tpu.memory_space<vmem>>, %arg4: memref<32x1xf32, #tpu.memory_space<vmem>>, %arg5: memref<32x32xf32, #tpu.memory_space<vmem>>, %arg6: memref<32x1xf32, #tpu.memory_space<vmem>>, %arg7: memref<8x32xf32, #tpu.memory_space<vmem>>, %arg8: memref<8x1xf32, #tpu.memory_space<vmem>>, %arg9: memref<5x256xf32, #tpu.memory_space<vmem>>) attributes {dimension_semantics = [#tpu.dimension_semantics<parallel>], iteration_bounds = array<i64: 1>, scalar_prefetch = 0 : i64, scratch_operands = 0 : i64, tpu.core_type = #tpu.core_type<tc>, window_params = [{transform_indices = @transform_0, window_bounds = array<i64: 16, 256>}, {transform_indices = @transform_1, window_bounds = array<i64: 4, 256>}, {pipeline_mode = #tpu.pipeline_mode<synchronous>, transform_indices = @transform_2, window_bounds = array<i64: 32, 16>}, {pipeline_mode = #tpu.pipeline_mode<synchronous>, transform_indices = @transform_3, window_bounds = array<i64: 32, 1>}, {pipeline_mode = #tpu.pipeline_mode<synchronous>, transform_indices = @transform_4, window_bounds = array<i64: 32, 32>}, {pipeline_mode = #tpu.pipeline_mode<synchronous>, transform_indices = @transform_5, window_bounds = array<i64: 32, 1>}, {pipeline_mode = #tpu.pipeline_mode<synchronous>, transform_indices = @transform_6, window_bounds = array<i64: 8, 32>}, {pipeline_mode = #tpu.pipeline_mode<synchronous>, transform_indices = @transform_7, window_bounds = array<i64: 8, 1>}, {transform_indices = @transform_8, window_bounds = array<i64: 5, 256>}]} {
    %c0 = arith.constant 0 : index
    %c0_0 = arith.constant 0 : index
    %0 = vector.load %arg1[%c0, %c0_0] : memref<16x256xf32, #tpu.memory_space<vmem>>, vector<16x256xf32>
    %c0_1 = arith.constant 0 : index
    %c0_2 = arith.constant 0 : index
    %1 = vector.load %arg3[%c0_1, %c0_2] : memref<32x16xf32, #tpu.memory_space<vmem>>, vector<32x16xf32>
    %cst = arith.constant dense<0.000000e+00> : vector<32x256xf32>
    %2 = tpu.matmul %1, %0, %cst {dimension_numbers = #tpu.dot_dimension_numbers<[1], [0], [0], [1], [0, 0, 1, 1], [], []>} : vector<32x16xf32>, vector<16x256xf32>, vector<32x256xf32> -> vector<32x256xf32>
    %c0_3 = arith.constant 0 : index
    %c0_4 = arith.constant 0 : index
    %3 = vector.load %arg4[%c0_3, %c0_4] : memref<32x1xf32, #tpu.memory_space<vmem>>, vector<32x1xf32>
    %4 = vector.broadcast %3 : vector<32x1xf32> to vector<32x256xf32>
    %5 = arith.addf %2, %4 : vector<32x256xf32>
    %cst_5 = arith.constant 0.000000e+00 : f32
    %6 = vector.broadcast %cst_5 : f32 to vector<32x256xf32>
    %7 = arith.maximumf %5, %6 : vector<32x256xf32>
    %c0_6 = arith.constant 0 : index
    %c0_7 = arith.constant 0 : index
    %8 = vector.load %arg5[%c0_6, %c0_7] : memref<32x32xf32, #tpu.memory_space<vmem>>, vector<32x32xf32>
    %cst_8 = arith.constant dense<0.000000e+00> : vector<32x256xf32>
    %9 = tpu.matmul %8, %7, %cst_8 {dimension_numbers = #tpu.dot_dimension_numbers<[1], [0], [0], [1], [0, 0, 1, 1], [], []>} : vector<32x32xf32>, vector<32x256xf32>, vector<32x256xf32> -> vector<32x256xf32>
    %c0_9 = arith.constant 0 : index
    %c0_10 = arith.constant 0 : index
    %10 = vector.load %arg6[%c0_9, %c0_10] : memref<32x1xf32, #tpu.memory_space<vmem>>, vector<32x1xf32>
    %11 = vector.broadcast %10 : vector<32x1xf32> to vector<32x256xf32>
    %12 = arith.addf %9, %11 : vector<32x256xf32>
    %cst_11 = arith.constant 0.000000e+00 : f32
    %13 = vector.broadcast %cst_11 : f32 to vector<32x256xf32>
    %14 = arith.maximumf %12, %13 : vector<32x256xf32>
    %c0_12 = arith.constant 0 : index
    %c0_13 = arith.constant 0 : index
    %15 = vector.load %arg7[%c0_12, %c0_13] : memref<8x32xf32, #tpu.memory_space<vmem>>, vector<8x32xf32>
    %cst_14 = arith.constant dense<0.000000e+00> : vector<8x256xf32>
    %16 = tpu.matmul %15, %14, %cst_14 {dimension_numbers = #tpu.dot_dimension_numbers<[1], [0], [0], [1], [0, 0, 1, 1], [], []>} : vector<8x32xf32>, vector<32x256xf32>, vector<8x256xf32> -> vector<8x256xf32>
    %c0_15 = arith.constant 0 : index
    %c0_16 = arith.constant 0 : index
    %17 = vector.load %arg8[%c0_15, %c0_16] : memref<8x1xf32, #tpu.memory_space<vmem>>, vector<8x1xf32>
    %18 = vector.broadcast %17 : vector<8x1xf32> to vector<8x256xf32>
    %19 = arith.addf %16, %18 : vector<8x256xf32>
    %20 = vector.extract_strided_slice %19 {offsets = [0, 0], sizes = [4, 256], strides = [1, 1]} : vector<8x256xf32> to vector<4x256xf32>
    %21 = vector.extract_strided_slice %19 {offsets = [4, 0], sizes = [4, 256], strides = [1, 1]} : vector<8x256xf32> to vector<4x256xf32>
    %cst_17 = arith.constant -2.000000e+01 : f32
    %cst_18 = arith.constant 2.000000e+00 : f32
    %22 = vector.broadcast %cst_17 : f32 to vector<4x256xf32>
    %23 = arith.maximumf %22, %21 : vector<4x256xf32>
    %24 = vector.broadcast %cst_18 : f32 to vector<4x256xf32>
    %25 = arith.minimumf %24, %23 : vector<4x256xf32>
    %26 = math.exp %25 : vector<4x256xf32>
    %c0_19 = arith.constant 0 : index
    %c0_20 = arith.constant 0 : index
    %27 = vector.load %arg2[%c0_19, %c0_20] : memref<4x256xf32, #tpu.memory_space<vmem>>, vector<4x256xf32>
    %28 = arith.mulf %26, %27 : vector<4x256xf32>
    %29 = arith.addf %20, %28 : vector<4x256xf32>
    %cst_21 = arith.constant -2.000000e+00 : f32
    %30 = vector.broadcast %cst_21 : f32 to vector<4x256xf32>
    %31 = arith.mulf %30, %29 : vector<4x256xf32>
    %cst_22 = arith.constant 0.000000e+00 : f32
    %32 = vector.broadcast %cst_22 : f32 to vector<4x256xf32>
    %33 = arith.maximumf %31, %32 : vector<4x256xf32>
    %34 = math.absf %31 : vector<4x256xf32>
    %cst_23 = arith.constant 0.000000e+00 : f32
    %35 = vector.broadcast %cst_23 : f32 to vector<4x256xf32>
    %36 = arith.subf %35, %34 : vector<4x256xf32>
    %37 = math.exp %36 : vector<4x256xf32>
    %cst_24 = arith.constant 1.000000e+00 : f32
    %38 = vector.broadcast %cst_24 : f32 to vector<4x256xf32>
    %39 = arith.addf %38, %37 : vector<4x256xf32>
    %40 = math.log %39 : vector<4x256xf32>
    %41 = arith.addf %33, %40 : vector<4x256xf32>
    %42 = arith.mulf %27, %27 : vector<4x256xf32>
    %cst_25 = arith.constant dense<0.000000e+00> : vector<256xf32>
    %43 = vector.multi_reduction <add>, %42, %cst_25 [0] : vector<4x256xf32> to vector<256xf32>
    %44 = vector.shape_cast %43 : vector<256xf32> to vector<1x256xf32>
    %cst_26 = arith.constant 5.000000e-01 : f32
    %45 = vector.broadcast %cst_26 : f32 to vector<1x256xf32>
    %46 = arith.mulf %45, %44 : vector<1x256xf32>
    %cst_27 = arith.constant -9.220932 : f32
    %47 = vector.broadcast %cst_27 : f32 to vector<1x256xf32>
    %48 = arith.subf %47, %46 : vector<1x256xf32>
    %cst_28 = arith.constant dense<0.000000e+00> : vector<256xf32>
    %49 = vector.multi_reduction <add>, %25, %cst_28 [0] : vector<4x256xf32> to vector<256xf32>
    %50 = vector.shape_cast %49 : vector<256xf32> to vector<1x256xf32>
    %51 = arith.subf %48, %50 : vector<1x256xf32>
    %52 = arith.addf %29, %41 : vector<4x256xf32>
    %cst_29 = arith.constant dense<0.000000e+00> : vector<256xf32>
    %53 = vector.multi_reduction <add>, %52, %cst_29 [0] : vector<4x256xf32> to vector<256xf32>
    %54 = vector.shape_cast %53 : vector<256xf32> to vector<1x256xf32>
    %cst_30 = arith.constant 2.000000e+00 : f32
    %55 = vector.broadcast %cst_30 : f32 to vector<1x256xf32>
    %56 = arith.mulf %55, %54 : vector<1x256xf32>
    %57 = arith.addf %51, %56 : vector<1x256xf32>
    %58 = math.tanh %29 : vector<4x256xf32>
    %cst_31 = arith.constant 1.000000e+00 : f32
    %59 = vector.broadcast %cst_31 : f32 to vector<4x256xf32>
    %60 = arith.mulf %59, %58 : vector<4x256xf32>
    %c0_32 = arith.constant 0 : index
    %c0_33 = arith.constant 0 : index
    %61 = vector.load %arg9[%c0_32, %c0_33] : memref<5x256xf32, #tpu.memory_space<vmem>>, vector<4x256xf32>
    tpu.vector_store %arg9[%c0_32, %c0_33], %60 {strides = array<i32>} : memref<5x256xf32, #tpu.memory_space<vmem>>, vector<4x256xf32>,
    %c4 = arith.constant 4 : index
    %c0_34 = arith.constant 0 : index
    %62 = vector.load %arg9[%c4, %c0_34] : memref<5x256xf32, #tpu.memory_space<vmem>>, vector<1x256xf32>
    tpu.vector_store %arg9[%c4, %c0_34], %57 {strides = array<i32>} : memref<5x256xf32, #tpu.memory_space<vmem>>, vector<1x256xf32>,
    return
  }
  func.func @transform_0(%arg0: i32) -> (i32, i32) {
    %c0_i32 = arith.constant 0 : i32
    %c0_i32_0 = arith.constant 0 : i32
    return %c0_i32, %arg0 : i32, i32
  }
  func.func @transform_1(%arg0: i32) -> (i32, i32) {
    %c0_i32 = arith.constant 0 : i32
    %c0_i32_0 = arith.constant 0 : i32
    return %c0_i32, %arg0 : i32, i32
  }
  func.func @transform_2(%arg0: i32) -> (i32, i32) {
    %c0_i32 = arith.constant 0 : i32
    %c0_i32_0 = arith.constant 0 : i32
    %c0_i32_1 = arith.constant 0 : i32
    return %c0_i32, %c0_i32_0 : i32, i32
  }
  func.func @transform_3(%arg0: i32) -> (i32, i32) {
    %c0_i32 = arith.constant 0 : i32
    %c0_i32_0 = arith.constant 0 : i32
    %c0_i32_1 = arith.constant 0 : i32
    return %c0_i32, %c0_i32_0 : i32, i32
  }
  func.func @transform_4(%arg0: i32) -> (i32, i32) {
    %c0_i32 = arith.constant 0 : i32
    %c0_i32_0 = arith.constant 0 : i32
    %c0_i32_1 = arith.constant 0 : i32
    return %c0_i32, %c0_i32_0 : i32, i32
  }
  func.func @transform_5(%arg0: i32) -> (i32, i32) {
    %c0_i32 = arith.constant 0 : i32
    %c0_i32_0 = arith.constant 0 : i32
    %c0_i32_1 = arith.constant 0 : i32
    return %c0_i32, %c0_i32_0 : i32, i32
  }
  func.func @transform_6(%arg0: i32) -> (i32, i32) {
    %c0_i32 = arith.constant 0 : i32
    %c0_i32_0 = arith.constant 0 : i32
    %c0_i32_1 = arith.constant 0 : i32
    return %c0_i32, %c0_i32_0 : i32, i32
  }
  func.func @transform_7(%arg0: i32) -> (i32, i32) {
    %c0_i32 = arith.constant 0 : i32
    %c0_i32_0 = arith.constant 0 : i32
    %c0_i32_1 = arith.constant 0 : i32
    return %c0_i32, %c0_i32_0 : i32, i32
  }
  func.func @transform_8(%arg0: i32) -> (i32, i32) {
    %c0_i32 = arith.constant 0 : i32
    %c0_i32_0 = arith.constant 0 : i32
    return %c0_i32, %arg0 : i32, i32
  }
}

</mosaic_0001>

<llo_original>
// kernel: tpu_custom_call.1
$region0: #{tpu_custom_call.1}
  #allocation0 [shape = 'u32[]', space=smem, size = 0x4, offset = 0x4, fixed_abs, tag = 'smem constant byte address 0x4 - core index']
  #allocation1 [shape = 'u32[144,128]{1,0:T(1,128)}', space=vmem, size = 0x12000, scoped, tag = 'internal scratch']
  %s0 = inlined_call_operand.vmem [shape: f32[16,256], index: 0, kind: input, shape index: {}]
  %s1 = inlined_call_operand.vmem [shape: f32[4,256], index: 1, kind: input, shape index: {}]
  %s2 = inlined_call_operand.vmem [shape: f32[32,16], index: 2, kind: input, shape index: {}]
  %s3 = inlined_call_operand.vmem [shape: f32[32,1], index: 3, kind: input, shape index: {}]
  %s4 = inlined_call_operand.vmem [shape: f32[32,32], index: 4, kind: input, shape index: {}]
  %s5 = inlined_call_operand.vmem [shape: f32[32,1], index: 5, kind: input, shape index: {}]
  %s6 = inlined_call_operand.vmem [shape: f32[8,32], index: 6, kind: input, shape index: {}]
  %s7 = inlined_call_operand.vmem [shape: f32[8,1], index: 7, kind: input, shape index: {}]
  %s8 = inlined_call_operand.hbm [shape: f32[5,256], index: 8, kind: output, shape index: {}]
  %s9 = sld [smem:[#allocation0]]
  $region42: #{tpu_custom_call.1} parent=0
    _
  %s11 = ssub.s32 1, %s9
  %s12 = scalar_select 0, %s11, %s9
  $region1: #{tpu_custom_call.1} parent=0
    #allocation2 [shape = 'u8[8192]{0}', space=vmem, size = 0x2000, scoped, tag = 'output window, operand 0, single buffered']
    #allocation3 [shape = 's32[1]{0}', space=sflag, size = 0x4, scoped, tag = 'scoped memory for tpu_custom_call.1']
    %13 = vsyncpa [#allocation3], 0
    // Predicated region
    $region2: #{tpu_custom_call.1} parent=1 // pred_check
      _
    $region3: #{tpu_custom_call.1} parent=1 // pred_check_branch
      %15 = sbr.rel (0) target = $region5
    $region4: #{tpu_custom_call.1} parent=1 // pred_region
      _
    $region5: #{tpu_custom_call.1} parent=1 // pred_fallthru
      _
    // Predicated region
    $region6: #{tpu_custom_call.1} parent=1 // pred_check
      _
    $region7: #{tpu_custom_call.1} parent=1 // pred_check_branch
      %17 = sbr.rel (0) target = $region9
    $region8: #{tpu_custom_call.1} parent=1 // pred_region
      _
    $region9: #{tpu_custom_call.1} parent=1 // pred_fallthru
      _
    // Predicated region
    $region10: #{tpu_custom_call.1} parent=1 // pred_check
      _
    $region11: #{tpu_custom_call.1} parent=1 // pred_check_branch
      %19 = sbr.rel (0) target = $region13
    $region12: #{tpu_custom_call.1} parent=1 // pred_region
      _
    $region13: #{tpu_custom_call.1} parent=1 // pred_fallthru
      _
    // Predicated region
    $region14: #{tpu_custom_call.1} parent=1 // pred_check
      _
    $region15: #{tpu_custom_call.1} parent=1 // pred_check_branch
      %21 = sbr.rel (0) target = $region17
    $region16: #{tpu_custom_call.1} parent=1 // pred_region
      _
    $region17: #{tpu_custom_call.1} parent=1 // pred_fallthru
      _
    // Predicated region
    $region18: #{tpu_custom_call.1} parent=1 // pred_check
      _
    $region19: #{tpu_custom_call.1} parent=1 // pred_check_branch
      %23 = sbr.rel (0) target = $region21
    $region20: #{tpu_custom_call.1} parent=1 // pred_region
      _
    $region21: #{tpu_custom_call.1} parent=1 // pred_fallthru
      _
    // Predicated region
    $region22: #{tpu_custom_call.1} parent=1 // pred_check
      _
    $region23: #{tpu_custom_call.1} parent=1 // pred_check_branch
      %25 = sbr.rel (0) target = $region25
    $region24: #{tpu_custom_call.1} parent=1 // pred_region
      _
    $region25: #{tpu_custom_call.1} parent=1 // pred_fallthru
      _
    // Predicated region
    $region26: #{tpu_custom_call.1} parent=1 // pred_check
      _
    $region27: #{tpu_custom_call.1} parent=1 // pred_check_branch
      %27 = sbr.rel (0) target = $region29
    $region28: #{tpu_custom_call.1} parent=1 // pred_region
      _
    $region29: #{tpu_custom_call.1} parent=1 // pred_fallthru
      _
    // Predicated region
    $region30: #{tpu_custom_call.1} parent=1 // pred_check
      _
    $region31: #{tpu_custom_call.1} parent=1 // pred_check_branch
      %29 = sbr.rel (0) target = $region33
    $region32: #{tpu_custom_call.1} parent=1 // pred_region
      _
    $region33: #{tpu_custom_call.1} parent=1 // pred_fallthru
      _
    %v30 = vld [vmem:[%s0] sm:$0xff]
    %v31 = vld [vmem:[%s0 + $0x8] sm:$0xff]
    %v32 = vld [vmem:[%s0 + $0x10] sm:$0xff]
    %v33 = vld [vmem:[%s0 + $0x18] sm:$0xff]
    %v34 = vld [vmem:[%s2] sm:$0xff]
    %v35 = vld [vmem:[%s2 + $0x8] sm:$0xff]
    %v36 = vld [vmem:[%s2 + $0x10] sm:$0xff]
    %v37 = vld [vmem:[%s2 + $0x18] sm:$0xff]
    %v38 = vld [vmem:[%s3] sm:$0xff]
    %v39 = vld [vmem:[%s3 + $0x8] sm:$0xff]
    %v40 = vld [vmem:[%s3 + $0x10] sm:$0xff]
    %v41 = vld [vmem:[%s3 + $0x18] sm:$0xff]
    %43 = vset.pattern.permute.xlu0 0
    %44 = vperm.xlu0 %43, %v38
    %v45 = vpop.permute.xlu0 %44
    %48 = vset.pattern.permute.xlu0 0
    %49 = vperm.xlu0 %48, %v39
    %v50 = vpop.permute.xlu0 %49
    %53 = vset.pattern.permute.xlu0 0
    %54 = vperm.xlu0 %53, %v40
    %v55 = vpop.permute.xlu0 %54
    %58 = vset.pattern.permute.xlu0 0
    %59 = vperm.xlu0 %58, %v41
    %v60 = vpop.permute.xlu0 %59
    %vm62 = vcmask 130048
    %v64 = vsel %vm62, %v34, 0
    %v67 = vsel %vm62, %v35, 0
    %v70 = vsel %vm62, %v36, 0
    %v73 = vsel %vm62, %v37, 0
    %75 = vmatprep.subr.mxu0 %v31
    %76 = vmatpush1.msra.mxu0 %v30
    %77 = vmatprep.subr.mxu0 %v33
    %78 = vmatpush1.msra.mxu0 %v32
    %79 = vmatprep.subr.mxu0 0.0
    %80 = vmatpush1.msra.mxu0 0.0
    %81 = vmatprep.subr.mxu0 0.0
    %82 = vmatpush1.msra.mxu0 0.0
    %83 = vmatprep.subr.mxu0 0.0
    %84 = vmatpush1.msra.mxu0 0.0
    %85 = vmatprep.subr.mxu0 0.0
    %86 = vmatpush1.msra.mxu0 0.0
    %87 = vmatprep.subr.mxu0 0.0
    %88 = vmatpush1.msra.mxu0 0.0
    %89 = vmatprep.subr.mxu0 0.0
    %90 = vmatpush1.msra.mxu0 0.0
    %91 = vmatprep.subr.mxu0 0.0
    %92 = vmatpush1.msra.mxu0 0.0
    %93 = vmatprep.subr.mxu0 0.0
    %94 = vmatpush1.msra.mxu0 0.0
    %95 = vmatprep.subr.mxu0 0.0
    %96 = vmatpush1.msra.mxu0 0.0
    %97 = vmatprep.subr.mxu0 0.0
    %98 = vmatpush1.msra.mxu0 0.0
    %99 = vmatprep.subr.mxu0 0.0
    %100 = vmatpush1.msra.mxu0 0.0
    %101 = vmatprep.subr.mxu0 0.0
    %102 = vmatpush1.msra.mxu0 0.0
    %103 = vmatprep.subr.mxu0 0.0
    %104 = vmatpush1.msra.mxu0 0.0
    %105 = vmatprep.subr.mxu0 0.0
    %106 = vmatpush1.msra.mxu0 0.0
    %107 = vmatprep.subr.mxu0 0.0
    %108 = vmatpush1.msra.mxu0 0.0
    %109 = vmatprep.subr.mxu0 0.0
    %110 = vmatpush1.msra.mxu0 0.0
    %111 = vmatprep.subr.mxu0 0.0
    %112 = vmatpush1.msra.mxu0 0.0
    %113 = vmatprep.subr.mxu0 0.0
    %114 = vmatpush1.msra.mxu0 0.0
    %115 = vmatprep.subr.mxu0 0.0
    %116 = vmatpush1.msra.mxu0 0.0
    %117 = vmatprep.subr.mxu0 0.0
    %118 = vmatpush1.msra.mxu0 0.0
    %119 = vmatprep.subr.mxu0 0.0
    %120 = vmatpush1.msra.mxu0 0.0
    %121 = vmatprep.subr.mxu0 0.0
    %122 = vmatpush1.msra.mxu0 0.0
    %123 = vmatprep.subr.mxu0 0.0
    %124 = vmatpush1.msra.mxu0 0.0
    %125 = vmatprep.subr.mxu0 0.0
    %126 = vmatpush1.msra.mxu0 0.0
    %127 = vmatprep.subr.mxu0 0.0
    %128 = vmatpush1.msra.mxu0 0.0
    %129 = vmatprep.subr.mxu0 0.0
    %130 = vmatpush1.msra.mxu0 0.0
    %131 = vmatprep.subr.mxu0 0.0
    %132 = vmatpush1.msra.mxu0 0.0
    %133 = vmatprep.subr.mxu0 0.0
    %134 = vmatpush1.msra.mxu0 0.0
    %135 = vmatprep.subr.mxu0 0.0
    %136 = vmatpush1.msra.mxu0 0.0
    %137 = vmatprep.subr.mxu0 0.0
    %138 = vmatpush1.msra.mxu0 0.0
    %139 = vmatprep.mubr.f32.mxu0 0.0
    %140 = vmatmul.mubr.f32.gmra.mrb[0].mxu0 %v64
    %v141 = vpop.f32.mrb[0].mxu0
    %v142 = vadd.f32 %v45, %v141
    %v143 = vpop.f32.mrb[0].mxu0
    %v144 = vadd.f32 %v45, %v143
    %145 = vmatprep.mubr.f32.mxu0 0.0
    %146 = vmatmul.mubr.f32.gmra.mrb[0].mxu0 %v67
    %v147 = vpop.f32.mrb[0].mxu0
    %v148 = vadd.f32 %v50, %v147
    %v149 = vpop.f32.mrb[0].mxu0
    %v150 = vadd.f32 %v50, %v149
    %151 = vmatprep.mubr.f32.mxu0 0.0
    %152 = vmatmul.mubr.f32.gmra.mrb[0].mxu0 %v70
    %v153 = vpop.f32.mrb[0].mxu0
    %v154 = vadd.f32 %v55, %v153
    %v155 = vpop.f32.mrb[0].mxu0
    %v156 = vadd.f32 %v55, %v155
    %157 = vmatprep.mubr.f32.mxu0 0.0
    %158 = vmatmul.mubr.f32.gmra.mrb[0].mxu0 %v73
    %v159 = vpop.f32.mrb[0].mxu0
    %v160 = vadd.f32 %v60, %v159
    %v161 = vpop.f32.mrb[0].mxu0
    %v162 = vadd.f32 %v60, %v161
    %163 = vdwg.mxu0
    %v164 = vmax.f32 %v142, 0.0
    %v165 = vmax.f32 %v144, 0.0
    %v166 = vmax.f32 %v148, 0.0
    %v167 = vmax.f32 %v150, 0.0
    %v168 = vmax.f32 %v154, 0.0
    %v169 = vmax.f32 %v156, 0.0
    %v170 = vmax.f32 %v160, 0.0
    %v171 = vmax.f32 %v162, 0.0
    %v172 = vld [vmem:[%s4] sm:$0xff]
    %v173 = vld [vmem:[%s4 + $0x8] sm:$0xff]
    %v174 = vld [vmem:[%s4 + $0x10] sm:$0xff]
    %v175 = vld [vmem:[%s4 + $0x18] sm:$0xff]
    %v176 = vld [vmem:[%s5] sm:$0xff]
    %v177 = vld [vmem:[%s5 + $0x8] sm:$0xff]
    %v178 = vld [vmem:[%s5 + $0x10] sm:$0xff]
    %v179 = vld [vmem:[%s5 + $0x18] sm:$0xff]
    %181 = vset.pattern.permute.xlu0 0
    %182 = vperm.xlu0 %181, %v176
    %v183 = vpop.permute.xlu0 %182
    %186 = vset.pattern.permute.xlu0 0
    %187 = vperm.xlu0 %186, %v177
    %v188 = vpop.permute.xlu0 %187
    %191 = vset.pattern.permute.xlu0 0
    %192 = vperm.xlu0 %191, %v178
    %v193 = vpop.permute.xlu0 %192
    %196 = vset.pattern.permute.xlu0 0
    %197 = vperm.xlu0 %196, %v179
    %v198 = vpop.permute.xlu0 %197
    %vm200 = vcmask 261120
    %v202 = vsel %vm200, %v172, 0
    %v205 = vsel %vm200, %v173, 0
    %v208 = vsel %vm200, %v174, 0
    %v211 = vsel %vm200, %v175, 0
    %213 = vmatprep.subr.mxu0 %v165
    %214 = vmatpush1.msra.mxu0 %v164
    %215 = vmatprep.subr.mxu0 %v167
    %216 = vmatpush1.msra.mxu0 %v166
    %217 = vmatprep.subr.mxu0 %v169
    %218 = vmatpush1.msra.mxu0 %v168
    %219 = vmatprep.subr.mxu0 %v171
    %220 = vmatpush1.msra.mxu0 %v170
    %221 = vmatprep.subr.mxu0 0.0
    %222 = vmatpush1.msra.mxu0 0.0
    %223 = vmatprep.subr.mxu0 0.0
    %224 = vmatpush1.msra.mxu0 0.0
    %225 = vmatprep.subr.mxu0 0.0
    %226 = vmatpush1.msra.mxu0 0.0
    %227 = vmatprep.subr.mxu0 0.0
    %228 = vmatpush1.msra.mxu0 0.0
    %229 = vmatprep.subr.mxu0 0.0
    %230 = vmatpush1.msra.mxu0 0.0
    %231 = vmatprep.subr.mxu0 0.0
    %232 = vmatpush1.msra.mxu0 0.0
    %233 = vmatprep.subr.mxu0 0.0
    %234 = vmatpush1.msra.mxu0 0.0
    %235 = vmatprep.subr.mxu0 0.0
    %236 = vmatpush1.msra.mxu0 0.0
    %237 = vmatprep.subr.mxu0 0.0
    %238 = vmatpush1.msra.mxu0 0.0
    %239 = vmatprep.subr.mxu0 0.0
    %240 = vmatpush1.msra.mxu0 0.0
    %241 = vmatprep.subr.mxu0 0.0
    %242 = vmatpush1.msra.mxu0 0.0
    %243 = vmatprep.subr.mxu0 0.0
    %244 = vmatpush1.msra.mxu0 0.0
    %245 = vmatprep.subr.mxu0 0.0
    %246 = vmatpush1.msra.mxu0 0.0
    %247 = vmatprep.subr.mxu0 0.0
    %248 = vmatpush1.msra.mxu0 0.0
    %249 = vmatprep.subr.mxu0 0.0
    %250 = vmatpush1.msra.mxu0 0.0
    %251 = vmatprep.subr.mxu0 0.0
    %252 = vmatpush1.msra.mxu0 0.0
    %253 = vmatprep.subr.mxu0 0.0
    %254 = vmatpush1.msra.mxu0 0.0
    %255 = vmatprep.subr.mxu0 0.0
    %256 = vmatpush1.msra.mxu0 0.0
    %257 = vmatprep.subr.mxu0 0.0
    %258 = vmatpush1.msra.mxu0 0.0
    %259 = vmatprep.subr.mxu0 0.0
    %260 = vmatpush1.msra.mxu0 0.0
    %261 = vmatprep.subr.mxu0 0.0
    %262 = vmatpush1.msra.mxu0 0.0
    %263 = vmatprep.subr.mxu0 0.0
    %264 = vmatpush1.msra.mxu0 0.0
    %265 = vmatprep.subr.mxu0 0.0
    %266 = vmatpush1.msra.mxu0 0.0
    %267 = vmatprep.subr.mxu0 0.0
    %268 = vmatpush1.msra.mxu0 0.0
    %269 = vmatprep.subr.mxu0 0.0
    %270 = vmatpush1.msra.mxu0 0.0
    %271 = vmatprep.subr.mxu0 0.0
    %272 = vmatpush1.msra.mxu0 0.0
    %273 = vmatprep.subr.mxu0 0.0
    %274 = vmatpush1.msra.mxu0 0.0
    %275 = vmatprep.subr.mxu0 0.0
    %276 = vmatpush1.msra.mxu0 0.0
    %277 = vmatprep.mubr.f32.mxu0 0.0
    %278 = vmatmul.mubr.f32.gmra.mrb[0].mxu0 %v202
    %v279 = vpop.f32.mrb[0].mxu0
    %v280 = vadd.f32 %v183, %v279
    %v281 = vpop.f32.mrb[0].mxu0
    %v282 = vadd.f32 %v183, %v281
    %283 = vmatprep.mubr.f32.mxu0 0.0
    %284 = vmatmul.mubr.f32.gmra.mrb[0].mxu0 %v205
    %v285 = vpop.f32.mrb[0].mxu0
    %v286 = vadd.f32 %v188, %v285
    %v287 = vpop.f32.mrb[0].mxu0
    %v288 = vadd.f32 %v188, %v287
    %289 = vmatprep.mubr.f32.mxu0 0.0
    %290 = vmatmul.mubr.f32.gmra.mrb[0].mxu0 %v208
    %v291 = vpop.f32.mrb[0].mxu0
    %v292 = vadd.f32 %v193, %v291
    %v293 = vpop.f32.mrb[0].mxu0
    %v294 = vadd.f32 %v193, %v293
    %295 = vmatprep.mubr.f32.mxu0 0.0
    %296 = vmatmul.mubr.f32.gmra.mrb[0].mxu0 %v211
    %v297 = vpop.f32.mrb[0].mxu0
    %v298 = vadd.f32 %v198, %v297
    %v299 = vpop.f32.mrb[0].mxu0
    %v300 = vadd.f32 %v198, %v299
    %301 = vdwg.mxu0
    %v302 = vmax.f32 %v280, 0.0
    %v303 = vmax.f32 %v282, 0.0
    %v304 = vmax.f32 %v286, 0.0
    %v305 = vmax.f32 %v288, 0.0
    %v306 = vmax.f32 %v292, 0.0
    %v307 = vmax.f32 %v294, 0.0
    %v308 = vmax.f32 %v298, 0.0
    %v309 = vmax.f32 %v300, 0.0
    %v310 = vld [vmem:[%s6] sm:$0xff]
    %v311 = vld [vmem:[%s7] sm:$0xff]
    %313 = vset.pattern.permute.xlu0 0
    %314 = vperm.xlu0 %313, %v311
    %v315 = vpop.permute.xlu0 %314
    %v318 = vsel %vm200, %v310, 0
    %320 = vmatprep.subr.mxu0 %v303
    %321 = vmatpush1.msra.mxu0 %v302
    %322 = vmatprep.subr.mxu0 %v305
    %323 = vmatpush1.msra.mxu0 %v304
    %324 = vmatprep.subr.mxu0 %v307
    %325 = vmatpush1.msra.mxu0 %v306
    %326 = vmatprep.subr.mxu0 %v309
    %327 = vmatpush1.msra.mxu0 %v308
    %328 = vmatprep.subr.mxu0 0.0
    %329 = vmatpush1.msra.mxu0 0.0
    %330 = vmatprep.subr.mxu0 0.0
    %331 = vmatpush1.msra.mxu0 0.0
    %332 = vmatprep.subr.mxu0 0.0
    %333 = vmatpush1.msra.mxu0 0.0
    %334 = vmatprep.subr.mxu0 0.0
    %335 = vmatpush1.msra.mxu0 0.0
    %336 = vmatprep.subr.mxu0 0.0
    %337 = vmatpush1.msra.mxu0 0.0
    %338 = vmatprep.subr.mxu0 0.0
    %339 = vmatpush1.msra.mxu0 0.0
    %340 = vmatprep.subr.mxu0 0.0
    %341 = vmatpush1.msra.mxu0 0.0
    %342 = vmatprep.subr.mxu0 0.0
    %343 = vmatpush1.msra.mxu0 0.0
    %344 = vmatprep.subr.mxu0 0.0
    %345 = vmatpush1.msra.mxu0 0.0
    %346 = vmatprep.subr.mxu0 0.0
    %347 = vmatpush1.msra.mxu0 0.0
    %348 = vmatprep.subr.mxu0 0.0
    %349 = vmatpush1.msra.mxu0 0.0
    %350 = vmatprep.subr.mxu0 0.0
    %351 = vmatpush1.msra.mxu0 0.0
    %352 = vmatprep.subr.mxu0 0.0
    %353 = vmatpush1.msra.mxu0 0.0
    %354 = vmatprep.subr.mxu0 0.0
    %355 = vmatpush1.msra.mxu0 0.0
    %356 = vmatprep.subr.mxu0 0.0
    %357 = vmatpush1.msra.mxu0 0.0
    %358 = vmatprep.subr.mxu0 0.0
    %359 = vmatpush1.msra.mxu0 0.0
    %360 = vmatprep.subr.mxu0 0.0
    %361 = vmatpush1.msra.mxu0 0.0
    %362 = vmatprep.subr.mxu0 0.0
    %363 = vmatpush1.msra.mxu0 0.0
    %364 = vmatprep.subr.mxu0 0.0
    %365 = vmatpush1.msra.mxu0 0.0
    %366 = vmatprep.subr.mxu0 0.0
    %367 = vmatpush1.msra.mxu0 0.0
    %368 = vmatprep.subr.mxu0 0.0
    %369 = vmatpush1.msra.mxu0 0.0
    %370 = vmatprep.subr.mxu0 0.0
    %371 = vmatpush1.msra.mxu0 0.0
    %372 = vmatprep.subr.mxu0 0.0
    %373 = vmatpush1.msra.mxu0 0.0
    %374 = vmatprep.subr.mxu0 0.0
    %375 = vmatpush1.msra.mxu0 0.0
    %376 = vmatprep.subr.mxu0 0.0
    %377 = vmatpush1.msra.mxu0 0.0
    %378 = vmatprep.subr.mxu0 0.0
    %379 = vmatpush1.msra.mxu0 0.0
    %380 = vmatprep.subr.mxu0 0.0
    %381 = vmatpush1.msra.mxu0 0.0
    %382 = vmatprep.subr.mxu0 0.0
    %383 = vmatpush1.msra.mxu0 0.0
    %384 = vmatprep.mubr.f32.mxu0 0.0
    %385 = vmatmul.mubr.f32.gmra.mrb[0].mxu0 %v318
    %v386 = vpop.f32.mrb[0].mxu0
    %v387 = vadd.f32 %v315, %v386
    %v388 = vpop.f32.mrb[0].mxu0
    %v389 = vadd.f32 %v315, %v388
    %390 = vdwg.mxu0
    %v391 = vmax.f32 %v387, -20.0
    %v392 = vmax.f32 %v389, -20.0
    %v393 = vmin.f32 %v391, 2.0
    %v394 = vmin.f32 %v392, 2.0
    %v395 = vmul.f32 %v393, 1.442695
    %v396 = vpow.pop %v395
    %v397 = vmul.f32 %v394, 1.442695
    %v398 = vpow.pop %v397
    %v399 = vld [vmem:[%s1] sm:$0xff]
    %v401 = vcombine.low %v399, %v399
    %v403 = vmul.f32 %v396, %v401
    %v404 = vmul.f32 %v398, %v399
    %v407 = vrot.slane %v403, 4
    %v408 = vrot.slane %v404, 4
    %v411 = vadd.f32 %v387, %v407
    %v412 = vadd.f32 %v389, %v408
    %v413 = vmul.f32 %v411, -2.0
    %v414 = vmul.f32 %v412, -2.0
    %v415 = vmax.f32 %v413, 0.0
    %v416 = vmax.f32 %v414, 0.0
    %v417 = vand.u32 2147483647, %v413
    %v418 = vand.u32 2147483647, %v414
    %v419 = vsub.f32 0.0, %v417
    %v420 = vsub.f32 0.0, %v418
    %v421 = vmul.f32 %v419, 1.442695
    %v422 = vpow.pop %v421
    %v423 = vmul.f32 %v420, 1.442695
    %v424 = vpow.pop %v423
    %v425 = vadd.f32 %v422, 1.0
    %v426 = vadd.f32 %v424, 1.0
    %v427 = vlog2.pop %v425
    %v428 = vmul.f32 %v427, 0.6931472
    %v429 = vlog2.pop %v426
    %v430 = vmul.f32 %v429, 0.6931472
    %v431 = vadd.f32 %v415, %v428
    %v432 = vadd.f32 %v416, %v430
    %v433 = vmul.f32 %v399, %v399
    %v435 = vcombine.high %v433, %v433
    %vm437 = vcmask 1043456
    %v438 = vsel %vm437, %v433, 0.0
    %v439 = vrot.slane %v438, 4
    %v440 = vadd.f32 %v438, %v439
    %v441 = vrot.slane %v440, 2
    %v442 = vadd.f32 %v440, %v441
    %v443 = vrot.slane %v442, 1
    %v444 = vadd.f32 %v442, %v443
    %v445 = vsel %vm437, %v435, 0.0
    %v446 = vrot.slane %v445, 4
    %v447 = vadd.f32 %v445, %v446
    %v448 = vrot.slane %v447, 2
    %v449 = vadd.f32 %v447, %v448
    %v450 = vrot.slane %v449, 1
    %v451 = vadd.f32 %v449, %v450
    %v452 = vmul.f32 %v444, 0.5
    %v453 = vmul.f32 %v451, 0.5
    %v454 = vsub.f32 -9.220932, %v452
    %v455 = vsub.f32 -9.220932, %v453
    %v458 = vrot.slane %v393, 4
    %v459 = vrot.slane %v394, 4
    %v462 = vsel %vm437, %v458, 0.0
    %v463 = vrot.slane %v462, 4
    %v464 = vadd.f32 %v462, %v463
    %v465 = vrot.slane %v464, 2
    %v466 = vadd.f32 %v464, %v465
    %v467 = vrot.slane %v466, 1
    %v468 = vadd.f32 %v466, %v467
    %v469 = vsel %vm437, %v459, 0.0
    %v470 = vrot.slane %v469, 4
    %v471 = vadd.f32 %v469, %v470
    %v472 = vrot.slane %v471, 2
    %v473 = vadd.f32 %v471, %v472
    %v474 = vrot.slane %v473, 1
    %v475 = vadd.f32 %v473, %v474
    %v476 = vsub.f32 %v454, %v468
    %v477 = vsub.f32 %v455, %v475
    %v478 = vadd.f32 %v411, %v431
    %v479 = vadd.f32 %v412, %v432
    %v480 = vsel %vm437, %v478, 0.0
    %v481 = vrot.slane %v480, 4
    %v482 = vadd.f32 %v480, %v481
    %v483 = vrot.slane %v482, 2
    %v484 = vadd.f32 %v482, %v483
    %v485 = vrot.slane %v484, 1
    %v486 = vadd.f32 %v484, %v485
    %v487 = vsel %vm437, %v479, 0.0
    %v488 = vrot.slane %v487, 4
    %v489 = vadd.f32 %v487, %v488
    %v490 = vrot.slane %v489, 2
    %v491 = vadd.f32 %v489, %v490
    %v492 = vrot.slane %v491, 1
    %v493 = vadd.f32 %v491, %v492
    %v494 = vmul.f32 %v486, 2.0
    %v495 = vmul.f32 %v493, 2.0
    %v496 = vadd.f32 %v476, %v494
    %v497 = vadd.f32 %v477, %v495
    %v498 = vtanh.pop %v411
    %v499 = vtanh.pop %v412
    %500 = vst [vmem:[#allocation2] sm:$0xf] %v498
    %501 = vst [vmem:[#allocation2 + $0x8] sm:$0xf] %v499
    %v504 = vcombine.low %v496, %v497
    %v506 = vunpack.c.l.s4 1966171168
    %v507 = vunpack.c.0.s8 %v506
    %v508 = vlaneseq
    %v509 = vshrl.u32 %v508, 7
    %v510 = vsub.s32 %v507, %v509
    %v511 = vrot.slane %v504, %v510
    %v513 = vunpack.c.l.s4 1966171168
    %v514 = vunpack.c.0.s8 %v513
    %v515 = vlaneseq
    %v516 = vshrl.u32 %v515, 7
    %v517 = vsub.s32 %v514, %v516
    %v518 = vrot.slane %v511, %v517
    %v520 = vlaneseq
    %vm521 = vcmp.ge.s32.totalorder %v520, 0
    %vm522 = vcmp.lt.s32.totalorder %v520, 256
    %vm523 = vmand %vm521, %vm522
    %s524 = scalar_lea.vmem [#allocation2], 4
    %525 = vst.msk [vmem:[%s524] ss:$8 sm:$0x3] %vm523, %v518
    %526 = vst.msk [vmem:[%s524] ss:$8 sm:$0x0] %vm523, %v518
    // Predicated region
    $region34: #{tpu_custom_call.1} parent=1 // pred_check
      _
    $region35: #{tpu_custom_call.1} parent=1 // pred_check_branch
      %528 = sbr.rel (0) target = $region37
    $region36: #{tpu_custom_call.1} parent=1 // pred_region
      %s530 = ssub.s32 256, 256
      %531 = vsyncadd [#allocation3], %s530
      %s533 = sshll.u32 [#allocation2], 4
      %s534 = int_to_ptr.vmem [resolvable:$true] %s533
      %536 = dma.vmem_to_hbm [thread:$0]  %s534, 256, %s8, [#allocation3]
    $region37: #{tpu_custom_call.1} parent=1 // pred_fallthru
      _
    // Predicated region
    $region38: #{tpu_custom_call.1} parent=1 // pred_check
      _
    $region39: #{tpu_custom_call.1} parent=1 // pred_check_branch
      %538 = sbr.rel (0) target = $region41
    $region40: #{tpu_custom_call.1} parent=1 // pred_region
      %539 = dma.done [#allocation3], 256
    $region41: #{tpu_custom_call.1} parent=1 // pred_fallthru
      _
    %540 = vsyncpa [#allocation3], 1

</llo_original>
